<compile_context>
chip_gen: v6e
topology: v6e:2x2x1
jax: 0.10.0
libtpu: 0.0.40
codegen_flags: <defaults>
</compile_context>

<pallas_src>
import functools

import jax
import jax.numpy as jnp
from jax import lax
from jax.experimental import pallas as pl
from jax.experimental.pallas import tpu as pltpu


_LOG_CLAMP = -100.0              # PyTorch BCELoss clamps log() at -100.
_SUBLANES = 8
_LANES = 128
_MAX_BLOCK_ELEMS = 512 * 1024    # per-input elements per grid step (<= 2 MiB f32)


def _cdiv(a, b):
    return -(-a // b)


def _round_up(n, m):
    return _cdiv(n, m) * m


def _vmem_limit_bytes():
    """Generation-aware scoped-VMEM limit (v5e/v6e: 128 MiB phys, v7x: 64 MiB)."""
    cap = 64 * 1024 * 1024
    try:
        cap = int(pltpu.get_tpu_info().vmem_capacity_bytes)
    except Exception:
        pass
    # Worst-case usage here: 2 inputs x 2 buffers x 2 MiB + 2 MiB acc = 10 MiB.
    return max(16 * 1024 * 1024, min(cap // 2, 48 * 1024 * 1024))


# ---------------------------------------------------------------------------
# Elementwise term functions (applied to f32 blocks inside the kernel).
# ---------------------------------------------------------------------------
def _bce_elem(p, t):
    """PyTorch-style BCE per element (log clamped at -100). Soft targets OK.

    NOTE: the binary-target shortcut (-log(where(t>0.5, p, 1-p))) would halve
    the EUP work but only matches BCELoss for exactly {0,1} targets, so we keep
    the general form.
    """
    logp = jnp.maximum(jnp.log(p), _LOG_CLAMP)
    log1mp = jnp.maximum(jnp.log(1.0 - p), _LOG_CLAMP)
    return -(t * logp + (1.0 - t) * log1mp)


def _kl_std_normal_elem(logvar, mu):
    """Per-element contribution of KL(N(mu, exp(logvar)) || N(0, 1)) * 2."""
    return -logvar - 1.0 + jnp.exp(logvar) + mu * mu


# ---------------------------------------------------------------------------
# Generic masked pair reduction:  out = scale * sum(elem_fn(a, b)).
# ---------------------------------------------------------------------------
def _pair_reduce_kernel(a_ref, b_ref, out_ref, acc_ref, *,
                        elem_fn, n_cols, neutral_a, neutral_b, scale):
    i = pl.program_id(0)

    @pl.when(i == 0)
    def _():
        acc_ref[...] = jnp.zeros_like(acc_ref)

    rows, lanes = acc_ref.shape
    # Global column index of each lane; out-of-range tail lanes of a partial
    # last block are replaced by neutral values BEFORE any transcendental.
    col = i * lanes + lax.broadcasted_iota(jnp.int32, (rows, lanes), 1)
    valid = col < n_cols

    a = jnp.where(valid, a_ref[...].astype(jnp.float32), neutral_a)
    b = jnp.where(valid, b_ref[...].astype(jnp.float32), neutral_b)

    # Loop-carried dependency stays in the vector domain (plain vadd).
    acc_ref[...] += elem_fn(a, b)

    @pl.when(i == pl.num_programs(0) - 1)
    def _():
        # Single cross-lane/sublane reduction + scale + SMEM store, once.
        out_ref[0] = jnp.sum(acc_ref[...]) * scale


def _pair_reduce(a, b, elem_fn, neutral_a, neutral_b, scale):
    """scale * sum(elem_fn(a, b)) over all elements, vreg-dense & lane-tiled."""
    assert a.shape == b.shape, (a.shape, b.shape)
    n = a.size
    a = a.reshape(-1)
    b = b.reshape(-1)

    # Only a (<8)-element neutral tail is ever appended; the reshape below is
    # a free metadata-only change (contiguous, row-major).
    rem = (-n) % _SUBLANES
    if rem:
        a = jnp.concatenate([a, jnp.full((rem,), neutral_a, a.dtype)])
        b = jnp.concatenate([b, jnp.full((rem,), neutral_b, b.dtype)])
    w = (n + rem) // _SUBLANES
    a2 = a.reshape(_SUBLANES, w)
    b2 = b.reshape(_SUBLANES, w)

    max_lanes = _MAX_BLOCK_ELEMS // _SUBLANES
    if w <= max_lanes:
        # Single block equal to the full array dims (always a legal block
        # shape); no partial-block garbage exists, mask is trivially all-true.
        tl, grid = w, 1
    else:
        # Minimise pad waste: spread columns evenly over the minimum number of
        # steps, rounded up to a 128-lane multiple.
        steps = _cdiv(w, max_lanes)
        tl = _round_up(_cdiv(w, steps), _LANES)
        grid = _cdiv(w, tl)

    kernel = functools.partial(
        _pair_reduce_kernel, elem_fn=elem_fn, n_cols=w,
        neutral_a=float(neutral_a), neutral_b=float(neutral_b),
        scale=float(scale))

    out = pl.pallas_call(
        kernel,
        out_shape=jax.ShapeDtypeStruct((1,), jnp.float32),
        grid=(grid,),
        in_specs=[pl.BlockSpec((_SUBLANES, tl), lambda i: (0, i)),
                  pl.BlockSpec((_SUBLANES, tl), lambda i: (0, i))],
        out_specs=pl.BlockSpec((1,), lambda i: (0,),
                               memory_space=pltpu.MemorySpace.SMEM),
        scratch_shapes=[pltpu.VMEM((_SUBLANES, tl), jnp.float32)],
        compiler_params=pltpu.CompilerParams(
            dimension_semantics=("arbitrary",),
            vmem_limit_bytes=_vmem_limit_bytes()),
    )(a2, b2)
    return out[0]


# ---------------------------------------------------------------------------
# Public wrapper mirroring VFAELoss.forward.
# ---------------------------------------------------------------------------
def vfae_loss(y_pred, y_true, alpha=1.0, beta=0.0, mmd_dim=0, mmd_gamma=1.0,
              return_components=False):
    """JAX/Pallas equivalent of VFAELoss.forward.

    Returns alpha * BCE(y_pred['y_decoded'], y_true['y']) — exactly what the
    PyTorch forward returns.  beta / mmd_* are accepted-but-unused, as in the
    reference forward.  The reconstruction BCE and KL(z1||N(0,I)) that PyTorch
    computes and then discards are only evaluated when
    `return_components=True`, in which case (value, components_dict) is
    returned.
    """
    y_dec = y_pred['y_decoded']
    y = y_true['y']
    # Supervised BCE: mean over all elements of y_decoded.
    sup = _pair_reduce(y_dec, y, _bce_elem, 1.0, 1.0, 1.0 / y_dec.size)

    if not return_components:
        return alpha * sup

    # One tiny wrapper-side concat keeps the kernel slice-free and lane-dense
    # (no non-128-aligned in-kernel split of x_decoded).
    x, s = y_true['x'], y_true['s']
    x_s = jnp.concatenate([x, s], axis=-1)
    x_dec = y_pred['x_decoded']
    rec = _pair_reduce(x_dec, x_s, _bce_elem, 1.0, 1.0, 1.0 / x_dec.size)

    lv = y_pred['z1_enc_logvar']
    mu = y_pred['z1_enc_mu']
    kl = _pair_reduce(lv, mu, _kl_std_normal_elem, 0.0, 0.0, 0.5 / lv.shape[0])

    loss = rec + alpha * sup + kl   # computed then discarded (mirrors PyTorch)
    components = {
        'supervised_loss': sup,
        'reconstruction_loss': rec,
        'kl_loss_z1': kl,
        'loss': loss,
    }
    return alpha * sup, components


if __name__ == "__main__":
    # Small deterministic shapes consistent with the VFAE forward.
    B, Dx, Ds, Dz = 8, 16, 1, 32
    key = jax.random.PRNGKey(0)
    k1, k2, k3, k4, k5, k6, k7 = jax.random.split(key, 7)

    x = jax.nn.sigmoid(jax.random.normal(k1, (B, Dx), jnp.float32))   # BCE targets in (0,1)
    s = (jax.random.uniform(k2, (B, Ds)) > 0.5).astype(jnp.float32)   # protected attribute {0,1}
    y = (jax.random.uniform(k3, (B, 1)) > 0.5).astype(jnp.float32)    # binary labels {0,1}
    y_true = {'x': x, 's': s, 'y': y}

    y_pred = {
        'y_decoded': jax.nn.sigmoid(jax.random.normal(k4, (B, 1), jnp.float32)),
        'x_decoded': jax.nn.sigmoid(jax.random.normal(k5, (B, Dx + Ds), jnp.float32)),
        'z1_enc_logvar': 0.1 * jax.random.normal(k6, (B, Dz), jnp.float32),
        'z1_enc_mu': jax.random.normal(k7, (B, Dz), jnp.float32),
    }

    def bce_ref(p, t):
        return jnp.mean(-(t * jnp.maximum(jnp.log(p), -100.0)
                          + (1.0 - t) * jnp.maximum(jnp.log(1.0 - p), -100.0)))

    # --- default (fast) path: exactly what the PyTorch forward returns -----
    out = vfae_loss(y_pred, y_true, alpha=1.0)
    out = jax.block_until_ready(out)
    ref = 1.0 * bce_ref(y_pred['y_decoded'], y)
    assert jnp.allclose(out, ref, rtol=1e-5, atol=1e-6), (out, ref)

    # --- gated full-components path (terms PyTorch computes then discards) --
    out2, comps = vfae_loss(y_pred, y_true, alpha=1.0, return_components=True)
    jax.block_until_ready((out2, comps))

    x_s = jnp.concatenate([x, s], axis=-1)
    rec_ref = bce_ref(y_pred['x_decoded'], x_s)
    lv, mu = y_pred['z1_enc_logvar'], y_pred['z1_enc_mu']
    kl_ref = jnp.mean(0.5 * jnp.sum(-lv - 1.0 + jnp.exp(lv) + mu * mu, axis=1))

    assert jnp.allclose(out2, ref, rtol=1e-5, atol=1e-6), (out2, ref)
    assert jnp.allclose(comps['supervised_loss'], ref, rtol=1e-5, atol=1e-6)
    assert jnp.allclose(comps['reconstruction_loss'], rec_ref, rtol=1e-5, atol=1e-5)
    assert jnp.allclose(comps['kl_loss_z1'], kl_ref, rtol=1e-5, atol=1e-5)

    # --- exercise the multi-step tiled + tail-masked path at small cost ----
    _saved_max = _MAX_BLOCK_ELEMS
    _MAX_BLOCK_ELEMS = 1024          # force grid > 1 and a partial last block
    Bs, Dss = 300, 7                 # 2100 elements -> rem pad + lane masking
    kp, kt = jax.random.split(jax.random.PRNGKey(1))
    p_big = jax.nn.sigmoid(jax.random.normal(kp, (Bs, Dss), jnp.float32))
    t_big = jax.nn.sigmoid(jax.random.normal(kt, (Bs, Dss), jnp.float32))
    got = _pair_reduce(p_big, t_big, _bce_elem, 1.0, 1.0, 1.0 / p_big.size)
    got = jax.block_until_ready(got)
    want = bce_ref(p_big, t_big)
    assert jnp.allclose(got, want, rtol=1e-5, atol=1e-5), (got, want)
    _MAX_BLOCK_ELEMS = _saved_max

    print("KERNEL_OK")
</pallas_src>

<mosaic_0001>
module attributes {stable_mosaic.version = 11 : i64} {
  func.func @_pair_reduce_kernel(%arg0: i32, %arg1: memref<8x1xf32, #tpu.memory_space<vmem>>, %arg2: memref<8x1xf32, #tpu.memory_space<vmem>>, %arg3: memref<1xf32, #tpu.memory_space<smem>>, %arg4: memref<8x1xf32, #tpu.memory_space<vmem>>) attributes {dimension_semantics = [#tpu.dimension_semantics<arbitrary>], iteration_bounds = array<i64: 1>, scalar_prefetch = 0 : i64, scratch_operands = 1 : i64, tpu.core_type = #tpu.core_type<tc>, window_params = [{transform_indices = @transform_0, window_bounds = array<i64: 8, 1>}, {transform_indices = @transform_1, window_bounds = array<i64: 8, 1>}, {transform_indices = @transform_2, window_bounds = array<i64: 1>}]} {
    %c0_i32 = arith.constant 0 : i32
    %0 = arith.cmpi eq, %arg0, %c0_i32 : i32
    %1 = arith.extui %0 : i1 to i32
    %c0_i32_0 = arith.constant 0 : i32
    %2 = arith.cmpi ne, %1, %c0_i32_0 : i32
    scf.if %2 {
      %cst_17 = arith.constant 0.000000e+00 : f32
      %36 = vector.broadcast %cst_17 : f32 to vector<8x1xf32>
      %c0_18 = arith.constant 0 : index
      %c0_19 = arith.constant 0 : index
      %37 = vector.load %arg4[%c0_18, %c0_19] : memref<8x1xf32, #tpu.memory_space<vmem>>, vector<8x1xf32>
      tpu.vector_store %arg4[%c0_18, %c0_19], %36 {strides = array<i32>} : memref<8x1xf32, #tpu.memory_space<vmem>>, vector<8x1xf32>,
    } else {
    }
    %c1_i32 = arith.constant 1 : i32
    %3 = arith.muli %arg0, %c1_i32 : i32
    %4 = tpu.iota {dimensions = array<i32: 1>} : vector<8x1xi32>
    %5 = vector.broadcast %3 : i32 to vector<8x1xi32>
    %6 = arith.addi %5, %4 : vector<8x1xi32>
    %c1_i32_1 = arith.constant 1 : i32
    %7 = vector.broadcast %c1_i32_1 : i32 to vector<8x1xi32>
    %8 = arith.cmpi slt, %6, %7 : vector<8x1xi32>
    %c0 = arith.constant 0 : index
    %c0_2 = arith.constant 0 : index
    %9 = vector.load %arg1[%c0, %c0_2] : memref<8x1xf32, #tpu.memory_space<vmem>>, vector<8x1xf32>
    %cst = arith.constant 1.000000e+00 : f32
    %10 = vector.broadcast %cst : f32 to vector<8x1xf32>
    %11 = arith.select %8, %9, %10 : vector<8x1xi1>, vector<8x1xf32>
    %c0_3 = arith.constant 0 : index
    %c0_4 = arith.constant 0 : index
    %12 = vector.load %arg2[%c0_3, %c0_4] : memref<8x1xf32, #tpu.memory_space<vmem>>, vector<8x1xf32>
    %cst_5 = arith.constant 1.000000e+00 : f32
    %13 = vector.broadcast %cst_5 : f32 to vector<8x1xf32>
    %14 = arith.select %8, %12, %13 : vector<8x1xi1>, vector<8x1xf32>
    %c0_6 = arith.constant 0 : index
    %c0_7 = arith.constant 0 : index
    %15 = vector.load %arg4[%c0_6, %c0_7] : memref<8x1xf32, #tpu.memory_space<vmem>>, vector<8x1xf32>
    %16 = math.log %11 : vector<8x1xf32>
    %cst_8 = arith.constant -1.000000e+02 : f32
    %17 = vector.broadcast %cst_8 : f32 to vector<8x1xf32>
    %18 = arith.maximumf %16, %17 : vector<8x1xf32>
    %cst_9 = arith.constant 1.000000e+00 : f32
    %19 = vector.broadcast %cst_9 : f32 to vector<8x1xf32>
    %20 = arith.subf %19, %11 : vector<8x1xf32>
    %21 = math.log %20 : vector<8x1xf32>
    %cst_10 = arith.constant -1.000000e+02 : f32
    %22 = vector.broadcast %cst_10 : f32 to vector<8x1xf32>
    %23 = arith.maximumf %21, %22 : vector<8x1xf32>
    %24 = arith.mulf %14, %18 : vector<8x1xf32>
    %cst_11 = arith.constant 1.000000e+00 : f32
    %25 = vector.broadcast %cst_11 : f32 to vector<8x1xf32>
    %26 = arith.subf %25, %14 : vector<8x1xf32>
    %27 = arith.mulf %26, %23 : vector<8x1xf32>
    %28 = arith.addf %24, %27 : vector<8x1xf32>
    %cst_12 = arith.constant 0.000000e+00 : f32
    %29 = vector.broadcast %cst_12 : f32 to vector<8x1xf32>
    %30 = arith.subf %29, %28 : vector<8x1xf32>
    %31 = arith.addf %15, %30 : vector<8x1xf32>
    %c0_13 = arith.constant 0 : index
    %c0_14 = arith.constant 0 : index
    %32 = vector.load %arg4[%c0_13, %c0_14] : memref<8x1xf32, #tpu.memory_space<vmem>>, vector<8x1xf32>
    tpu.vector_store %arg4[%c0_13, %c0_14], %31 {strides = array<i32>} : memref<8x1xf32, #tpu.memory_space<vmem>>, vector<8x1xf32>,
    %c0_i32_15 = arith.constant 0 : i32
    %33 = arith.cmpi eq, %arg0, %c0_i32_15 : i32
    %34 = arith.extui %33 : i1 to i32
    %c0_i32_16 = arith.constant 0 : i32
    %35 = arith.cmpi ne, %34, %c0_i32_16 : i32
    scf.if %35 {
      %c0_17 = arith.constant 0 : index
      %c0_18 = arith.constant 0 : index
      %36 = vector.load %arg4[%c0_17, %c0_18] : memref<8x1xf32, #tpu.memory_space<vmem>>, vector<8x1xf32>
      %37 = vector.shape_cast %36 : vector<8x1xf32> to vector<1x8x1xf32>
      %cst_19 = arith.constant dense<0.000000e+00> : vector<1xf32>
      %38 = vector.multi_reduction <add>, %37, %cst_19 [1, 2] : vector<1x8x1xf32> to vector<1xf32>
      %39 = vector.shape_cast %38 : vector<1xf32> to vector<1x1x1xf32>
      %40 = vector.extract %39[0, 0, 0] : f32 from vector<1x1x1xf32>
      %cst_20 = arith.constant 1.250000e-01 : f32
      %41 = arith.mulf %40, %cst_20 : f32
      %c0_21 = arith.constant 0 : index
      %42 = memref.load %arg3[%c0_21] : memref<1xf32, #tpu.memory_space<smem>>
      memref.store %41, %arg3[%c0_21] : memref<1xf32, #tpu.memory_space<smem>>
    } else {
    }
    return
  }
  func.func @transform_0(%arg0: i32) -> (i32, i32) {
    %c0_i32 = arith.constant 0 : i32
    %c0_i32_0 = arith.constant 0 : i32
    return %c0_i32, %arg0 : i32, i32
  }
  func.func @transform_1(%arg0: i32) -> (i32, i32) {
    %c0_i32 = arith.constant 0 : i32
    %c0_i32_0 = arith.constant 0 : i32
    return %c0_i32, %arg0 : i32, i32
  }
  func.func @transform_2(%arg0: i32) -> i32 {
    %c0_i32 = arith.constant 0 : i32
    %c0_i32_0 = arith.constant 0 : i32
    return %c0_i32 : i32
  }
}

</mosaic_0001>

<llo_original>
// kernel: tpu_custom_call.1
$region0: #{tpu_custom_call.1}
  #allocation0 [shape = 'u32[]', space=smem, size = 0x4, offset = 0x4, fixed_abs, tag = 'smem constant byte address 0x4 - core index']
  #allocation1 [shape = 'u32[144,128]{1,0:T(1,128)}', space=vmem, size = 0x12000, scoped, tag = 'internal scratch']
  #allocation2 [shape = 'f32[8,1]{1,0:T(8,128)}', space=vmem, size = 0x1000, scoped, tag = 'scratch operand']
  %s0 = inlined_call_operand.vmem [shape: f32[8,1], index: 0, kind: input, shape index: {}]
  %s1 = inlined_call_operand.vmem [shape: f32[8,1], index: 1, kind: input, shape index: {}]
  %s2 = inlined_call_operand.hbm [shape: f32[1], index: 2, kind: output, shape index: {}]
  %s3 = sld [smem:[#allocation0]]
  $region26: #{tpu_custom_call.1} parent=0
    _
  %s5 = ssub.s32 1, %s3
  %s6 = scalar_select 0, %s5, %s3
  $region1: #{tpu_custom_call.1} parent=0
    #allocation3 [shape = 'u8[512]{0}', space=smem, size = 0x200, scoped, tag = 'output window, operand 0, single buffered']
    #allocation4 [shape = 's32[1]{0}', space=sflag, size = 0x4, scoped, tag = 'scoped memory for tpu_custom_call.1']
    %7 = vsyncpa [#allocation4], 0
    // Predicated region
    $region2: #{tpu_custom_call.1} parent=1 // pred_check
      _
    $region3: #{tpu_custom_call.1} parent=1 // pred_check_branch
      %9 = sbr.rel (0) target = $region5
    $region4: #{tpu_custom_call.1} parent=1 // pred_region
      _
    $region5: #{tpu_custom_call.1} parent=1 // pred_fallthru
      _
    // Predicated region
    $region6: #{tpu_custom_call.1} parent=1 // pred_check
      _
    $region7: #{tpu_custom_call.1} parent=1 // pred_check_branch
      %11 = sbr.rel (0) target = $region9
    $region8: #{tpu_custom_call.1} parent=1 // pred_region
      _
    $region9: #{tpu_custom_call.1} parent=1 // pred_fallthru
      _
    %p12 = scmp.eq.s32.totalorder 0, 0
    // Predicated region
    $region10: #{tpu_custom_call.1} parent=1 // pred_check
      %p13 = pneg %p12
    $region11: #{tpu_custom_call.1} parent=1 // pred_check_branch
      %15 = sbr.rel (%p13) target = $region13
    $region12: #{tpu_custom_call.1} parent=1 // pred_region
      %vm16 = vcmask 7168
      %17 = vst.msk [vmem:[#allocation2] sm:$0xff] %vm16, 0.0
    $region13: #{tpu_custom_call.1} parent=1 // pred_fallthru
      _
    %v18 = vlaneseq
    %v19 = vand.u32 %v18, 127
    %v20 = vstv 0
    %v21 = vadd.s32 %v20, %v19
    %vm22 = vcmp.lt.s32.totalorder %v21, 1
    %v23 = vld [vmem:[%s0] sm:$0xff]
    %v24 = vsel %vm22, %v23, 1.0
    %v25 = vld [vmem:[%s1] sm:$0xff]
    %v26 = vsel %vm22, %v25, 1.0
    %v27 = vld [vmem:[#allocation2] sm:$0xff]
    %v28 = vlog2.pop %v24
    %v29 = vmul.f32 %v28, 0.6931472
    %v30 = vmax.f32 %v29, -100.0
    %v31 = vsub.f32 1.0, %v24
    %v32 = vlog2.pop %v31
    %v33 = vmul.f32 %v32, 0.6931472
    %v34 = vmax.f32 %v33, -100.0
    %v35 = vmul.f32 %v26, %v30
    %v36 = vsub.f32 1.0, %v26
    %v37 = vmul.f32 %v36, %v34
    %v38 = vadd.f32 %v35, %v37
    %v39 = vsub.f32 0.0, %v38
    %v40 = vadd.f32 %v27, %v39
    %vm41 = vcmask 7168
    %42 = vst.msk [vmem:[#allocation2] sm:$0xff] %vm41, %v40
    // Predicated region
    $region14: #{tpu_custom_call.1} parent=1 // pred_check
      %p43 = pneg %p12
    $region15: #{tpu_custom_call.1} parent=1 // pred_check_branch
      %45 = sbr.rel (%p43) target = $region17
    $region16: #{tpu_custom_call.1} parent=1 // pred_region
      %v46 = vld [vmem:[#allocation2] sm:$0xff]
      %v47 = vsel %vm41, %v46, 0.0
      %48 = vadd.xlane.f32.xlu0 %v47
      %v49 = vpop.xlane.xlu0 %48
      %v50 = vrot.slane %v49, 4
      %v51 = vadd.f32 %v49, %v50
      %v52 = vrot.slane %v51, 2
      %v53 = vadd.f32 %v51, %v52
      %v54 = vrot.slane %v53, 1
      %v55 = vadd.f32 %v53, %v54
      %s56 = vtos %v55
      %s57 = smul.f32 %s56, 0.125
      %s58 = scalar_lea.smem [#allocation3], 0
      %59 = sst [smem:[%s58]] %s57
    $region17: #{tpu_custom_call.1} parent=1 // pred_fallthru
      _
    // Predicated region
    $region18: #{tpu_custom_call.1} parent=1 // pred_check
      _
    $region19: #{tpu_custom_call.1} parent=1 // pred_check_branch
      %61 = sbr.rel (0) target = $region21
    $region20: #{tpu_custom_call.1} parent=1 // pred_region
      %s63 = ssub.s32 16, 16
      %64 = vsyncadd [#allocation4], %s63
      %67 = dma.smem_to_hbm [#allocation3], 16, %s2, [#allocation4]
    $region21: #{tpu_custom_call.1} parent=1 // pred_fallthru
      _
    // Predicated region
    $region22: #{tpu_custom_call.1} parent=1 // pred_check
      _
    $region23: #{tpu_custom_call.1} parent=1 // pred_check_branch
      %69 = sbr.rel (0) target = $region25
    $region24: #{tpu_custom_call.1} parent=1 // pred_region
      %70 = dma.done [#allocation4], 16
    $region25: #{tpu_custom_call.1} parent=1 // pred_fallthru
      _
    %71 = sfence
    %72 = vsyncpa [#allocation4], 1

</llo_original>
